<compile_context>
chip_gen: v7x
topology: tpu7x:2x2x1
jax: 0.10.0
libtpu: 0.0.40
codegen_flags: <defaults>
</compile_context>

<pallas_src>
import jax
import jax.numpy as jnp
from jax.experimental import pallas as pl
from jax.experimental.pallas import tpu as pltpu

LANE = 128


def conv1x1_relu_sub_kernel(w_ref, b_ref, x_ref, o_ref):
    """1x1 conv + relu + (-1.0) on the VPU with dense (S, 128) slabs.

    w_ref: (Cout*Cin,)   f32 in SMEM  (scalar weights, row-major [co, ci])
    b_ref: (Cout,)       f32 in SMEM  (scalar biases)
    x_ref: (Cin,  S, 128) f32 in VMEM (pixel axis packed sublane x lane)
    o_ref: (Cout, S, 128) f32 in VMEM
    """
    cin = x_ref.shape[0]
    cout = o_ref.shape[0]
    x = x_ref[...]                                   # (Cin, S, 128), load once
    for co in range(cout):                           # static unroll, Cout = 6
        acc = x[0] * w_ref[co * cin + 0]             # scalar * dense (S,128)
        for ci in range(1, cin):                     # static unroll, Cin = 3
            acc = acc + x[ci] * w_ref[co * cin + ci]
        acc = acc + b_ref[co]
        # Dense unmasked store of one full (S,128) channel slab.
        o_ref[co] = (jnp.maximum(acc, 0.0) - 1.0).astype(o_ref.dtype)


def conv1x1_relu_sub(x_nchw, weight, bias, *, block_rows=512):
    """x_nchw: (N, Cin, H, W); weight: (Cout, Cin); bias: (Cout,) -> (N, Cout, H, W)."""
    N, Cin, H, W = x_nchw.shape
    Cout = weight.shape[0]
    P = N * H * W

    # ---- Layout: get the pixel axis contiguous per channel (no HBM copy for N==1).
    if N == 1:
        x_rows = x_nchw.reshape(Cin, P)              # pure reshape, identical memory order
    else:
        # TODO(synk): for N > 1 this transpose is a real HBM shuffle; fold the
        # batch axis into the kernel grid if this path ever matters for perf.
        x_rows = jnp.transpose(x_nchw, (1, 0, 2, 3)).reshape(Cin, P)

    # Pad pixel axis to a multiple of 128 lanes (no-op for 64x64).
    Pp = ((P + LANE - 1) // LANE) * LANE
    if Pp != P:
        x_rows = jnp.pad(x_rows, ((0, 0), (0, Pp - P)))
    S = Pp // LANE
    x3 = x_rows.reshape(Cin, S, LANE)                # (Cin, S, 128): dense slabs

    w_flat = weight.reshape(-1).astype(jnp.float32)  # (Cout*Cin,) 1-D SMEM scalars
    b_flat = bias.astype(jnp.float32)                # (Cout,)

    smem = pl.BlockSpec(memory_space=pltpu.MemorySpace.SMEM)
    vmem = pl.BlockSpec(memory_space=pltpu.MemorySpace.VMEM)

    if S <= block_rows:
        # Whole problem fits comfortably in VMEM on v5e/v6e/v7x -> one step.
        out3 = pl.pallas_call(
            conv1x1_relu_sub_kernel,
            out_shape=jax.ShapeDtypeStruct((Cout, S, LANE), x3.dtype),
            in_specs=[smem, smem, vmem],
            out_specs=vmem,
        )(w_flat, b_flat, x3)
        Sp = S
    else:
        # Large pixel counts: 1-D parallel grid over pixel-row blocks
        # (restores pipelining and uses both v7x TensorCores).
        Sp = pl.cdiv(S, block_rows) * block_rows
        if Sp != S:
            x3 = jnp.pad(x3, ((0, 0), (0, Sp - S), (0, 0)))
        out3 = pl.pallas_call(
            conv1x1_relu_sub_kernel,
            out_shape=jax.ShapeDtypeStruct((Cout, Sp, LANE), x3.dtype),
            grid=(Sp // block_rows,),
            in_specs=[
                smem,
                smem,
                pl.BlockSpec((Cin, block_rows, LANE), lambda i: (0, i, 0)),
            ],
            out_specs=pl.BlockSpec((Cout, block_rows, LANE), lambda i: (0, i, 0)),
            compiler_params=pltpu.CompilerParams(
                dimension_semantics=("parallel",)),
        )(w_flat, b_flat, x3)

    out_rows = out3.reshape(Cout, Sp * LANE)[:, :P]  # drop lane/block padding
    if N == 1:
        return out_rows.reshape(1, Cout, H, W)       # pure reshape back to NCHW
    return jnp.transpose(out_rows.reshape(Cout, N, H, W), (1, 0, 2, 3))


if __name__ == "__main__":
    key = jax.random.PRNGKey(0)
    kx, kw, kb = jax.random.split(key, 3)

    N, Cin, H, W, Cout = 1, 3, 64, 64, 6

    x1 = jax.random.normal(kx, (N, Cin, H, W), dtype=jnp.float32)

    # Deterministic Conv2d(3, 6, 1) params, PyTorch-style uniform init.
    fan_in = Cin * 1 * 1
    bound = 1.0 / (fan_in ** 0.5)
    weight = jax.random.uniform(kw, (Cout, Cin), jnp.float32, -bound, bound)
    bias = jax.random.uniform(kb, (Cout,), jnp.float32, -bound, bound)

    out = jax.block_until_ready(conv1x1_relu_sub(x1, weight, bias))

    # Reference check in plain JAX.
    ref = jnp.einsum("nchw,oc->nohw", x1, weight) + bias[None, :, None, None]
    ref = jnp.maximum(ref, 0.0) - 1.0
    assert out.shape == (N, Cout, H, W)
    assert jnp.allclose(out, ref, atol=1e-5, rtol=1e-5)

    print("KERNEL_OK")
</pallas_src>

<mosaic_0001>
module attributes {stable_mosaic.version = 11 : i64} {
  func.func @conv1x1_relu_sub_kernel(%arg0: memref<18xf32, #tpu.memory_space<smem>>, %arg1: memref<6xf32, #tpu.memory_space<smem>>, %arg2: memref<3x32x128xf32, #tpu.memory_space<vmem>>, %arg3: memref<6x32x128xf32, #tpu.memory_space<vmem>>) attributes {dimension_semantics = [], scalar_prefetch = 0 : i64, scratch_operands = 0 : i64, tpu.core_type = #tpu.core_type<tc>} {
    %c0 = arith.constant 0 : index
    %c0_0 = arith.constant 0 : index
    %c0_1 = arith.constant 0 : index
    %0 = vector.load %arg2[%c0, %c0_0, %c0_1] : memref<3x32x128xf32, #tpu.memory_space<vmem>>, vector<3x32x128xf32>
    %1 = vector.extract_strided_slice %0 {offsets = [0, 0, 0], sizes = [1, 32, 128], strides = [1, 1, 1]} : vector<3x32x128xf32> to vector<1x32x128xf32>
    %2 = vector.shape_cast %1 : vector<1x32x128xf32> to vector<32x128xf32>
    %c0_2 = arith.constant 0 : index
    %3 = memref.load %arg0[%c0_2] : memref<18xf32, #tpu.memory_space<smem>>
    %4 = vector.broadcast %3 : f32 to vector<32x128xf32>
    %5 = arith.mulf %2, %4 : vector<32x128xf32>
    %6 = vector.extract_strided_slice %0 {offsets = [1, 0, 0], sizes = [1, 32, 128], strides = [1, 1, 1]} : vector<3x32x128xf32> to vector<1x32x128xf32>
    %7 = vector.shape_cast %6 : vector<1x32x128xf32> to vector<32x128xf32>
    %c1 = arith.constant 1 : index
    %8 = memref.load %arg0[%c1] : memref<18xf32, #tpu.memory_space<smem>>
    %9 = vector.broadcast %8 : f32 to vector<32x128xf32>
    %10 = arith.mulf %7, %9 : vector<32x128xf32>
    %11 = arith.addf %5, %10 : vector<32x128xf32>
    %12 = vector.extract_strided_slice %0 {offsets = [2, 0, 0], sizes = [1, 32, 128], strides = [1, 1, 1]} : vector<3x32x128xf32> to vector<1x32x128xf32>
    %13 = vector.shape_cast %12 : vector<1x32x128xf32> to vector<32x128xf32>
    %c2 = arith.constant 2 : index
    %14 = memref.load %arg0[%c2] : memref<18xf32, #tpu.memory_space<smem>>
    %15 = vector.broadcast %14 : f32 to vector<32x128xf32>
    %16 = arith.mulf %13, %15 : vector<32x128xf32>
    %17 = arith.addf %11, %16 : vector<32x128xf32>
    %c0_3 = arith.constant 0 : index
    %18 = memref.load %arg1[%c0_3] : memref<6xf32, #tpu.memory_space<smem>>
    %19 = vector.broadcast %18 : f32 to vector<32x128xf32>
    %20 = arith.addf %17, %19 : vector<32x128xf32>
    %cst = arith.constant 0.000000e+00 : f32
    %21 = vector.broadcast %cst : f32 to vector<32x128xf32>
    %22 = arith.maximumf %20, %21 : vector<32x128xf32>
    %cst_4 = arith.constant 1.000000e+00 : f32
    %23 = vector.broadcast %cst_4 : f32 to vector<32x128xf32>
    %24 = arith.subf %22, %23 : vector<32x128xf32>
    %c0_5 = arith.constant 0 : index
    %c0_6 = arith.constant 0 : index
    %c0_7 = arith.constant 0 : index
    %25 = vector.load %arg3[%c0_5, %c0_6, %c0_7] : memref<6x32x128xf32, #tpu.memory_space<vmem>>, vector<1x32x128xf32>
    %26 = vector.shape_cast %25 : vector<1x32x128xf32> to vector<32x128xf32>
    %27 = vector.shape_cast %24 : vector<32x128xf32> to vector<1x32x128xf32>
    tpu.vector_store %arg3[%c0_5, %c0_6, %c0_7], %27 {strides = array<i32>} : memref<6x32x128xf32, #tpu.memory_space<vmem>>, vector<1x32x128xf32>,
    %28 = vector.extract_strided_slice %0 {offsets = [0, 0, 0], sizes = [1, 32, 128], strides = [1, 1, 1]} : vector<3x32x128xf32> to vector<1x32x128xf32>
    %29 = vector.shape_cast %28 : vector<1x32x128xf32> to vector<32x128xf32>
    %c3 = arith.constant 3 : index
    %30 = memref.load %arg0[%c3] : memref<18xf32, #tpu.memory_space<smem>>
    %31 = vector.broadcast %30 : f32 to vector<32x128xf32>
    %32 = arith.mulf %29, %31 : vector<32x128xf32>
    %33 = vector.extract_strided_slice %0 {offsets = [1, 0, 0], sizes = [1, 32, 128], strides = [1, 1, 1]} : vector<3x32x128xf32> to vector<1x32x128xf32>
    %34 = vector.shape_cast %33 : vector<1x32x128xf32> to vector<32x128xf32>
    %c4 = arith.constant 4 : index
    %35 = memref.load %arg0[%c4] : memref<18xf32, #tpu.memory_space<smem>>
    %36 = vector.broadcast %35 : f32 to vector<32x128xf32>
    %37 = arith.mulf %34, %36 : vector<32x128xf32>
    %38 = arith.addf %32, %37 : vector<32x128xf32>
    %39 = vector.extract_strided_slice %0 {offsets = [2, 0, 0], sizes = [1, 32, 128], strides = [1, 1, 1]} : vector<3x32x128xf32> to vector<1x32x128xf32>
    %40 = vector.shape_cast %39 : vector<1x32x128xf32> to vector<32x128xf32>
    %c5 = arith.constant 5 : index
    %41 = memref.load %arg0[%c5] : memref<18xf32, #tpu.memory_space<smem>>
    %42 = vector.broadcast %41 : f32 to vector<32x128xf32>
    %43 = arith.mulf %40, %42 : vector<32x128xf32>
    %44 = arith.addf %38, %43 : vector<32x128xf32>
    %c1_8 = arith.constant 1 : index
    %45 = memref.load %arg1[%c1_8] : memref<6xf32, #tpu.memory_space<smem>>
    %46 = vector.broadcast %45 : f32 to vector<32x128xf32>
    %47 = arith.addf %44, %46 : vector<32x128xf32>
    %cst_9 = arith.constant 0.000000e+00 : f32
    %48 = vector.broadcast %cst_9 : f32 to vector<32x128xf32>
    %49 = arith.maximumf %47, %48 : vector<32x128xf32>
    %cst_10 = arith.constant 1.000000e+00 : f32
    %50 = vector.broadcast %cst_10 : f32 to vector<32x128xf32>
    %51 = arith.subf %49, %50 : vector<32x128xf32>
    %c1_11 = arith.constant 1 : index
    %c0_12 = arith.constant 0 : index
    %c0_13 = arith.constant 0 : index
    %52 = vector.load %arg3[%c1_11, %c0_12, %c0_13] : memref<6x32x128xf32, #tpu.memory_space<vmem>>, vector<1x32x128xf32>
    %53 = vector.shape_cast %52 : vector<1x32x128xf32> to vector<32x128xf32>
    %54 = vector.shape_cast %51 : vector<32x128xf32> to vector<1x32x128xf32>
    tpu.vector_store %arg3[%c1_11, %c0_12, %c0_13], %54 {strides = array<i32>} : memref<6x32x128xf32, #tpu.memory_space<vmem>>, vector<1x32x128xf32>,
    %55 = vector.extract_strided_slice %0 {offsets = [0, 0, 0], sizes = [1, 32, 128], strides = [1, 1, 1]} : vector<3x32x128xf32> to vector<1x32x128xf32>
    %56 = vector.shape_cast %55 : vector<1x32x128xf32> to vector<32x128xf32>
    %c6 = arith.constant 6 : index
    %57 = memref.load %arg0[%c6] : memref<18xf32, #tpu.memory_space<smem>>
    %58 = vector.broadcast %57 : f32 to vector<32x128xf32>
    %59 = arith.mulf %56, %58 : vector<32x128xf32>
    %60 = vector.extract_strided_slice %0 {offsets = [1, 0, 0], sizes = [1, 32, 128], strides = [1, 1, 1]} : vector<3x32x128xf32> to vector<1x32x128xf32>
    %61 = vector.shape_cast %60 : vector<1x32x128xf32> to vector<32x128xf32>
    %c7 = arith.constant 7 : index
    %62 = memref.load %arg0[%c7] : memref<18xf32, #tpu.memory_space<smem>>
    %63 = vector.broadcast %62 : f32 to vector<32x128xf32>
    %64 = arith.mulf %61, %63 : vector<32x128xf32>
    %65 = arith.addf %59, %64 : vector<32x128xf32>
    %66 = vector.extract_strided_slice %0 {offsets = [2, 0, 0], sizes = [1, 32, 128], strides = [1, 1, 1]} : vector<3x32x128xf32> to vector<1x32x128xf32>
    %67 = vector.shape_cast %66 : vector<1x32x128xf32> to vector<32x128xf32>
    %c8 = arith.constant 8 : index
    %68 = memref.load %arg0[%c8] : memref<18xf32, #tpu.memory_space<smem>>
    %69 = vector.broadcast %68 : f32 to vector<32x128xf32>
    %70 = arith.mulf %67, %69 : vector<32x128xf32>
    %71 = arith.addf %65, %70 : vector<32x128xf32>
    %c2_14 = arith.constant 2 : index
    %72 = memref.load %arg1[%c2_14] : memref<6xf32, #tpu.memory_space<smem>>
    %73 = vector.broadcast %72 : f32 to vector<32x128xf32>
    %74 = arith.addf %71, %73 : vector<32x128xf32>
    %cst_15 = arith.constant 0.000000e+00 : f32
    %75 = vector.broadcast %cst_15 : f32 to vector<32x128xf32>
    %76 = arith.maximumf %74, %75 : vector<32x128xf32>
    %cst_16 = arith.constant 1.000000e+00 : f32
    %77 = vector.broadcast %cst_16 : f32 to vector<32x128xf32>
    %78 = arith.subf %76, %77 : vector<32x128xf32>
    %c2_17 = arith.constant 2 : index
    %c0_18 = arith.constant 0 : index
    %c0_19 = arith.constant 0 : index
    %79 = vector.load %arg3[%c2_17, %c0_18, %c0_19] : memref<6x32x128xf32, #tpu.memory_space<vmem>>, vector<1x32x128xf32>
    %80 = vector.shape_cast %79 : vector<1x32x128xf32> to vector<32x128xf32>
    %81 = vector.shape_cast %78 : vector<32x128xf32> to vector<1x32x128xf32>
    tpu.vector_store %arg3[%c2_17, %c0_18, %c0_19], %81 {strides = array<i32>} : memref<6x32x128xf32, #tpu.memory_space<vmem>>, vector<1x32x128xf32>,
    %82 = vector.extract_strided_slice %0 {offsets = [0, 0, 0], sizes = [1, 32, 128], strides = [1, 1, 1]} : vector<3x32x128xf32> to vector<1x32x128xf32>
    %83 = vector.shape_cast %82 : vector<1x32x128xf32> to vector<32x128xf32>
    %c9 = arith.constant 9 : index
    %84 = memref.load %arg0[%c9] : memref<18xf32, #tpu.memory_space<smem>>
    %85 = vector.broadcast %84 : f32 to vector<32x128xf32>
    %86 = arith.mulf %83, %85 : vector<32x128xf32>
    %87 = vector.extract_strided_slice %0 {offsets = [1, 0, 0], sizes = [1, 32, 128], strides = [1, 1, 1]} : vector<3x32x128xf32> to vector<1x32x128xf32>
    %88 = vector.shape_cast %87 : vector<1x32x128xf32> to vector<32x128xf32>
    %c10 = arith.constant 10 : index
    %89 = memref.load %arg0[%c10] : memref<18xf32, #tpu.memory_space<smem>>
    %90 = vector.broadcast %89 : f32 to vector<32x128xf32>
    %91 = arith.mulf %88, %90 : vector<32x128xf32>
    %92 = arith.addf %86, %91 : vector<32x128xf32>
    %93 = vector.extract_strided_slice %0 {offsets = [2, 0, 0], sizes = [1, 32, 128], strides = [1, 1, 1]} : vector<3x32x128xf32> to vector<1x32x128xf32>
    %94 = vector.shape_cast %93 : vector<1x32x128xf32> to vector<32x128xf32>
    %c11 = arith.constant 11 : index
    %95 = memref.load %arg0[%c11] : memref<18xf32, #tpu.memory_space<smem>>
    %96 = vector.broadcast %95 : f32 to vector<32x128xf32>
    %97 = arith.mulf %94, %96 : vector<32x128xf32>
    %98 = arith.addf %92, %97 : vector<32x128xf32>
    %c3_20 = arith.constant 3 : index
    %99 = memref.load %arg1[%c3_20] : memref<6xf32, #tpu.memory_space<smem>>
    %100 = vector.broadcast %99 : f32 to vector<32x128xf32>
    %101 = arith.addf %98, %100 : vector<32x128xf32>
    %cst_21 = arith.constant 0.000000e+00 : f32
    %102 = vector.broadcast %cst_21 : f32 to vector<32x128xf32>
    %103 = arith.maximumf %101, %102 : vector<32x128xf32>
    %cst_22 = arith.constant 1.000000e+00 : f32
    %104 = vector.broadcast %cst_22 : f32 to vector<32x128xf32>
    %105 = arith.subf %103, %104 : vector<32x128xf32>
    %c3_23 = arith.constant 3 : index
    %c0_24 = arith.constant 0 : index
    %c0_25 = arith.constant 0 : index
    %106 = vector.load %arg3[%c3_23, %c0_24, %c0_25] : memref<6x32x128xf32, #tpu.memory_space<vmem>>, vector<1x32x128xf32>
    %107 = vector.shape_cast %106 : vector<1x32x128xf32> to vector<32x128xf32>
    %108 = vector.shape_cast %105 : vector<32x128xf32> to vector<1x32x128xf32>
    tpu.vector_store %arg3[%c3_23, %c0_24, %c0_25], %108 {strides = array<i32>} : memref<6x32x128xf32, #tpu.memory_space<vmem>>, vector<1x32x128xf32>,
    %109 = vector.extract_strided_slice %0 {offsets = [0, 0, 0], sizes = [1, 32, 128], strides = [1, 1, 1]} : vector<3x32x128xf32> to vector<1x32x128xf32>
    %110 = vector.shape_cast %109 : vector<1x32x128xf32> to vector<32x128xf32>
    %c12 = arith.constant 12 : index
    %111 = memref.load %arg0[%c12] : memref<18xf32, #tpu.memory_space<smem>>
    %112 = vector.broadcast %111 : f32 to vector<32x128xf32>
    %113 = arith.mulf %110, %112 : vector<32x128xf32>
    %114 = vector.extract_strided_slice %0 {offsets = [1, 0, 0], sizes = [1, 32, 128], strides = [1, 1, 1]} : vector<3x32x128xf32> to vector<1x32x128xf32>
    %115 = vector.shape_cast %114 : vector<1x32x128xf32> to vector<32x128xf32>
    %c13 = arith.constant 13 : index
    %116 = memref.load %arg0[%c13] : memref<18xf32, #tpu.memory_space<smem>>
    %117 = vector.broadcast %116 : f32 to vector<32x128xf32>
    %118 = arith.mulf %115, %117 : vector<32x128xf32>
    %119 = arith.addf %113, %118 : vector<32x128xf32>
    %120 = vector.extract_strided_slice %0 {offsets = [2, 0, 0], sizes = [1, 32, 128], strides = [1, 1, 1]} : vector<3x32x128xf32> to vector<1x32x128xf32>
    %121 = vector.shape_cast %120 : vector<1x32x128xf32> to vector<32x128xf32>
    %c14 = arith.constant 14 : index
    %122 = memref.load %arg0[%c14] : memref<18xf32, #tpu.memory_space<smem>>
    %123 = vector.broadcast %122 : f32 to vector<32x128xf32>
    %124 = arith.mulf %121, %123 : vector<32x128xf32>
    %125 = arith.addf %119, %124 : vector<32x128xf32>
    %c4_26 = arith.constant 4 : index
    %126 = memref.load %arg1[%c4_26] : memref<6xf32, #tpu.memory_space<smem>>
    %127 = vector.broadcast %126 : f32 to vector<32x128xf32>
    %128 = arith.addf %125, %127 : vector<32x128xf32>
    %cst_27 = arith.constant 0.000000e+00 : f32
    %129 = vector.broadcast %cst_27 : f32 to vector<32x128xf32>
    %130 = arith.maximumf %128, %129 : vector<32x128xf32>
    %cst_28 = arith.constant 1.000000e+00 : f32
    %131 = vector.broadcast %cst_28 : f32 to vector<32x128xf32>
    %132 = arith.subf %130, %131 : vector<32x128xf32>
    %c4_29 = arith.constant 4 : index
    %c0_30 = arith.constant 0 : index
    %c0_31 = arith.constant 0 : index
    %133 = vector.load %arg3[%c4_29, %c0_30, %c0_31] : memref<6x32x128xf32, #tpu.memory_space<vmem>>, vector<1x32x128xf32>
    %134 = vector.shape_cast %133 : vector<1x32x128xf32> to vector<32x128xf32>
    %135 = vector.shape_cast %132 : vector<32x128xf32> to vector<1x32x128xf32>
    tpu.vector_store %arg3[%c4_29, %c0_30, %c0_31], %135 {strides = array<i32>} : memref<6x32x128xf32, #tpu.memory_space<vmem>>, vector<1x32x128xf32>,
    %136 = vector.extract_strided_slice %0 {offsets = [0, 0, 0], sizes = [1, 32, 128], strides = [1, 1, 1]} : vector<3x32x128xf32> to vector<1x32x128xf32>
    %137 = vector.shape_cast %136 : vector<1x32x128xf32> to vector<32x128xf32>
    %c15 = arith.constant 15 : index
    %138 = memref.load %arg0[%c15] : memref<18xf32, #tpu.memory_space<smem>>
    %139 = vector.broadcast %138 : f32 to vector<32x128xf32>
    %140 = arith.mulf %137, %139 : vector<32x128xf32>
    %141 = vector.extract_strided_slice %0 {offsets = [1, 0, 0], sizes = [1, 32, 128], strides = [1, 1, 1]} : vector<3x32x128xf32> to vector<1x32x128xf32>
    %142 = vector.shape_cast %141 : vector<1x32x128xf32> to vector<32x128xf32>
    %c16 = arith.constant 16 : index
    %143 = memref.load %arg0[%c16] : memref<18xf32, #tpu.memory_space<smem>>
    %144 = vector.broadcast %143 : f32 to vector<32x128xf32>
    %145 = arith.mulf %142, %144 : vector<32x128xf32>
    %146 = arith.addf %140, %145 : vector<32x128xf32>
    %147 = vector.extract_strided_slice %0 {offsets = [2, 0, 0], sizes = [1, 32, 128], strides = [1, 1, 1]} : vector<3x32x128xf32> to vector<1x32x128xf32>
    %148 = vector.shape_cast %147 : vector<1x32x128xf32> to vector<32x128xf32>
    %c17 = arith.constant 17 : index
    %149 = memref.load %arg0[%c17] : memref<18xf32, #tpu.memory_space<smem>>
    %150 = vector.broadcast %149 : f32 to vector<32x128xf32>
    %151 = arith.mulf %148, %150 : vector<32x128xf32>
    %152 = arith.addf %146, %151 : vector<32x128xf32>
    %c5_32 = arith.constant 5 : index
    %153 = memref.load %arg1[%c5_32] : memref<6xf32, #tpu.memory_space<smem>>
    %154 = vector.broadcast %153 : f32 to vector<32x128xf32>
    %155 = arith.addf %152, %154 : vector<32x128xf32>
    %cst_33 = arith.constant 0.000000e+00 : f32
    %156 = vector.broadcast %cst_33 : f32 to vector<32x128xf32>
    %157 = arith.maximumf %155, %156 : vector<32x128xf32>
    %cst_34 = arith.constant 1.000000e+00 : f32
    %158 = vector.broadcast %cst_34 : f32 to vector<32x128xf32>
    %159 = arith.subf %157, %158 : vector<32x128xf32>
    %c5_35 = arith.constant 5 : index
    %c0_36 = arith.constant 0 : index
    %c0_37 = arith.constant 0 : index
    %160 = vector.load %arg3[%c5_35, %c0_36, %c0_37] : memref<6x32x128xf32, #tpu.memory_space<vmem>>, vector<1x32x128xf32>
    %161 = vector.shape_cast %160 : vector<1x32x128xf32> to vector<32x128xf32>
    %162 = vector.shape_cast %159 : vector<32x128xf32> to vector<1x32x128xf32>
    tpu.vector_store %arg3[%c5_35, %c0_36, %c0_37], %162 {strides = array<i32>} : memref<6x32x128xf32, #tpu.memory_space<vmem>>, vector<1x32x128xf32>,
    return
  }
}

</mosaic_0001>

<llo_original>
// kernel: tpu_custom_call.1
$region0: #{tpu_custom_call.1}
  #allocation0 [shape = 'u32[]', space=smem, size = 0x4, offset = 0x4, fixed_abs, tag = 'smem constant byte address 0x4 - core index']
  #allocation1 [shape = 'u32[144,128]{1,0:T(1,128)}', space=vmem, size = 0x12000, scoped, tag = 'internal scratch']
  %s0 = inlined_call_operand.hbm [shape: f32[18], index: 0, kind: input, shape index: {}]
  %s1 = inlined_call_operand.vmem [shape: f32[6], index: 1, kind: input, shape index: {}]
  %s2 = inlined_call_operand.hbm [shape: f32[3,32,128], index: 2, kind: input, shape index: {}]
  %s3 = inlined_call_operand.hbm [shape: f32[6,32,128], index: 3, kind: output, shape index: {}]
  %s4 = sld [smem:[#allocation0]]
  $region34: #{tpu_custom_call.1} parent=0
    _
  %s6 = ssub.s32 1, %s4
  %s7 = scalar_select 0, %s6, %s4
  $region1: #{tpu_custom_call.1} parent=0
    #allocation2 [shape = 'u8[512]{0}', space=smem, size = 0x200, scoped, tag = 'input window, operand 0, single buffered']
    #allocation3 [shape = 's32[1]{0}', space=sflag, size = 0x4, scoped, tag = 'scoped memory for tpu_custom_call.1']
    #allocation4 [shape = 's32[1]{0}', space=sflag, size = 0x4, scoped, tag = 'scoped memory for tpu_custom_call.1']
    #allocation5 [shape = 's32[1]{0}', space=sflag, size = 0x4, scoped, tag = 'scoped memory for tpu_custom_call.1']
    #allocation6 [shape = 's32[1]{0}', space=sflag, size = 0x4, scoped, tag = 'scoped memory for tpu_custom_call.1']
    #allocation7 [shape = 'u8[512]{0}', space=smem, size = 0x200, scoped, tag = 'input window, operand 1, single buffered']
    #allocation8 [shape = 'u8[49152]{0}', space=vmem, size = 0xc000, scoped, tag = 'input window, operand 2, single buffered']
    #allocation9 [shape = 'u8[98304]{0}', space=vmem, size = 0x18000, scoped, tag = 'output window, operand 0, single buffered']
    %8 = vsyncpa [#allocation5], 0
    %9 = vsyncpa [#allocation6], 0
    %10 = vsyncpa [#allocation3], 0
    %11 = vsyncpa [#allocation4], 0
    // Predicated region
    $region2: #{tpu_custom_call.1} parent=1 // pred_check
      _
    $region3: #{tpu_custom_call.1} parent=1 // pred_check_branch
      %13 = sbr.rel (0) target = $region5
    $region4: #{tpu_custom_call.1} parent=1 // pred_region
      %s15 = ssub.s32 16, 16
      %16 = vsyncadd [#allocation5], %s15
      %19 = dma.hbm_to_smem %s0, 16, [#allocation2], [#allocation5]
    $region5: #{tpu_custom_call.1} parent=1 // pred_fallthru
      _
    // Predicated region
    $region6: #{tpu_custom_call.1} parent=1 // pred_check
      _
    $region7: #{tpu_custom_call.1} parent=1 // pred_check_branch
      %21 = sbr.rel (0) target = $region9
    $region8: #{tpu_custom_call.1} parent=1 // pred_region
      %s23 = ssub.s32 16, 16
      %24 = vsyncadd [#allocation6], %s23
      %s26 = sshll.u32 %s1, 4
      %s27 = int_to_ptr.vmem [resolvable:$true] %s26
      %29 = dma.vmem_to_smem %s27, 16, [#allocation7], [#allocation6]
    $region9: #{tpu_custom_call.1} parent=1 // pred_fallthru
      _
    // Predicated region
    $region10: #{tpu_custom_call.1} parent=1 // pred_check
      _
    $region11: #{tpu_custom_call.1} parent=1 // pred_check_branch
      %31 = sbr.rel (0) target = $region13
    $region12: #{tpu_custom_call.1} parent=1 // pred_region
      %s33 = ssub.s32 1536, 1536
      %34 = vsyncadd [#allocation3], %s33
      %s35 = sshll.u32 [#allocation8], 4
      %s36 = int_to_ptr.vmem [resolvable:$true] %s35
      %41 = dma.hbm_to_vmem [thread:$0]  %s2, 1536, %s36, [#allocation3], 128, 128, 8
    $region13: #{tpu_custom_call.1} parent=1 // pred_fallthru
      _
    // Predicated region
    $region14: #{tpu_custom_call.1} parent=1 // pred_check
      _
    $region15: #{tpu_custom_call.1} parent=1 // pred_check_branch
      %43 = sbr.rel (0) target = $region17
    $region16: #{tpu_custom_call.1} parent=1 // pred_region
      %44 = dma.done [#allocation5], 16
    $region17: #{tpu_custom_call.1} parent=1 // pred_fallthru
      _
    // Predicated region
    $region18: #{tpu_custom_call.1} parent=1 // pred_check
      _
    $region19: #{tpu_custom_call.1} parent=1 // pred_check_branch
      %46 = sbr.rel (0) target = $region21
    $region20: #{tpu_custom_call.1} parent=1 // pred_region
      %47 = dma.done [#allocation6], 16
    $region21: #{tpu_custom_call.1} parent=1 // pred_fallthru
      _
    // Predicated region
    $region22: #{tpu_custom_call.1} parent=1 // pred_check
      _
    $region23: #{tpu_custom_call.1} parent=1 // pred_check_branch
      %49 = sbr.rel (0) target = $region25
    $region24: #{tpu_custom_call.1} parent=1 // pred_region
      %50 = dma.done [#allocation3], 1536
    $region25: #{tpu_custom_call.1} parent=1 // pred_fallthru
      _
    %51 = sfence
    %v52 = vld [vmem:[#allocation8] sm:$0xff]
    %v53 = vld [vmem:[#allocation8 + $0x8] sm:$0xff]
    %v54 = vld [vmem:[#allocation8 + $0x10] sm:$0xff]
    %v55 = vld [vmem:[#allocation8 + $0x18] sm:$0xff]
    %v56 = vld [vmem:[#allocation8 + $0x20] sm:$0xff]
    %v57 = vld [vmem:[#allocation8 + $0x28] sm:$0xff]
    %v58 = vld [vmem:[#allocation8 + $0x30] sm:$0xff]
    %v59 = vld [vmem:[#allocation8 + $0x38] sm:$0xff]
    %v60 = vld [vmem:[#allocation8 + $0x40] sm:$0xff]
    %v61 = vld [vmem:[#allocation8 + $0x48] sm:$0xff]
    %v62 = vld [vmem:[#allocation8 + $0x50] sm:$0xff]
    %v63 = vld [vmem:[#allocation8 + $0x58] sm:$0xff]
    %s64 = sld [smem:[#allocation2]]
    %v65 = vstv %s64
    %v66 = vmul.f32 %v52, %v65
    %v67 = vmul.f32 %v53, %v65
    %v68 = vmul.f32 %v54, %v65
    %v69 = vmul.f32 %v55, %v65
    %s70 = sld [smem:[#allocation2 + $0x1]]
    %v71 = vstv %s70
    %v72 = vmul.f32 %v56, %v71
    %v73 = vmul.f32 %v57, %v71
    %v74 = vmul.f32 %v58, %v71
    %v75 = vmul.f32 %v59, %v71
    %v76 = vadd.f32 %v66, %v72
    %v77 = vadd.f32 %v67, %v73
    %v78 = vadd.f32 %v68, %v74
    %v79 = vadd.f32 %v69, %v75
    %s80 = sld [smem:[#allocation2 + $0x2]]
    %v81 = vstv %s80
    %v82 = vmul.f32 %v60, %v81
    %v83 = vmul.f32 %v61, %v81
    %v84 = vmul.f32 %v62, %v81
    %v85 = vmul.f32 %v63, %v81
    %v86 = vadd.f32 %v76, %v82
    %v87 = vadd.f32 %v77, %v83
    %v88 = vadd.f32 %v78, %v84
    %v89 = vadd.f32 %v79, %v85
    %s90 = sld [smem:[#allocation7]]
    %v91 = vstv %s90
    %v92 = vadd.f32 %v86, %v91
    %v93 = vadd.f32 %v87, %v91
    %v94 = vadd.f32 %v88, %v91
    %v95 = vadd.f32 %v89, %v91
    %v96 = vmax.f32 %v92, 0.0
    %v97 = vmax.f32 %v93, 0.0
    %v98 = vmax.f32 %v94, 0.0
    %v99 = vmax.f32 %v95, 0.0
    %v100 = vsub.f32 %v96, 1.0
    %v101 = vsub.f32 %v97, 1.0
    %v102 = vsub.f32 %v98, 1.0
    %v103 = vsub.f32 %v99, 1.0
    %104 = vst [vmem:[#allocation9] sm:$0xff] %v100
    %105 = vst [vmem:[#allocation9 + $0x8] sm:$0xff] %v101
    %106 = vst [vmem:[#allocation9 + $0x10] sm:$0xff] %v102
    %107 = vst [vmem:[#allocation9 + $0x18] sm:$0xff] %v103
    %s108 = sld [smem:[#allocation2 + $0x3]]
    %v109 = vstv %s108
    %v110 = vmul.f32 %v52, %v109
    %v111 = vmul.f32 %v53, %v109
    %v112 = vmul.f32 %v54, %v109
    %v113 = vmul.f32 %v55, %v109
    %s114 = sld [smem:[#allocation2 + $0x4]]
    %v115 = vstv %s114
    %v116 = vmul.f32 %v56, %v115
    %v117 = vmul.f32 %v57, %v115
    %v118 = vmul.f32 %v58, %v115
    %v119 = vmul.f32 %v59, %v115
    %v120 = vadd.f32 %v110, %v116
    %v121 = vadd.f32 %v111, %v117
    %v122 = vadd.f32 %v112, %v118
    %v123 = vadd.f32 %v113, %v119
    %s124 = sld [smem:[#allocation2 + $0x5]]
    %v125 = vstv %s124
    %v126 = vmul.f32 %v60, %v125
    %v127 = vmul.f32 %v61, %v125
    %v128 = vmul.f32 %v62, %v125
    %v129 = vmul.f32 %v63, %v125
    %v130 = vadd.f32 %v120, %v126
    %v131 = vadd.f32 %v121, %v127
    %v132 = vadd.f32 %v122, %v128
    %v133 = vadd.f32 %v123, %v129
    %s134 = sld [smem:[#allocation7 + $0x1]]
    %v135 = vstv %s134
    %v136 = vadd.f32 %v130, %v135
    %v137 = vadd.f32 %v131, %v135
    %v138 = vadd.f32 %v132, %v135
    %v139 = vadd.f32 %v133, %v135
    %v140 = vmax.f32 %v136, 0.0
    %v141 = vmax.f32 %v137, 0.0
    %v142 = vmax.f32 %v138, 0.0
    %v143 = vmax.f32 %v139, 0.0
    %v144 = vsub.f32 %v140, 1.0
    %v145 = vsub.f32 %v141, 1.0
    %v146 = vsub.f32 %v142, 1.0
    %v147 = vsub.f32 %v143, 1.0
    %s148 = scalar_lea.vmem [#allocation9], 32
    %149 = vst [vmem:[%s148] sm:$0xff] %v144
    %150 = vst [vmem:[%s148 + $0x8] sm:$0xff] %v145
    %151 = vst [vmem:[%s148 + $0x10] sm:$0xff] %v146
    %152 = vst [vmem:[%s148 + $0x18] sm:$0xff] %v147
    %s153 = sld [smem:[#allocation2 + $0x6]]
    %v154 = vstv %s153
    %v155 = vmul.f32 %v52, %v154
    %v156 = vmul.f32 %v53, %v154
    %v157 = vmul.f32 %v54, %v154
    %v158 = vmul.f32 %v55, %v154
    %s159 = sld [smem:[#allocation2 + $0x7]]
    %v160 = vstv %s159
    %v161 = vmul.f32 %v56, %v160
    %v162 = vmul.f32 %v57, %v160
    %v163 = vmul.f32 %v58, %v160
    %v164 = vmul.f32 %v59, %v160
    %v165 = vadd.f32 %v155, %v161
    %v166 = vadd.f32 %v156, %v162
    %v167 = vadd.f32 %v157, %v163
    %v168 = vadd.f32 %v158, %v164
    %s169 = sld [smem:[#allocation2 + $0x8]]
    %v170 = vstv %s169
    %v171 = vmul.f32 %v60, %v170
    %v172 = vmul.f32 %v61, %v170
    %v173 = vmul.f32 %v62, %v170
    %v174 = vmul.f32 %v63, %v170
    %v175 = vadd.f32 %v165, %v171
    %v176 = vadd.f32 %v166, %v172
    %v177 = vadd.f32 %v167, %v173
    %v178 = vadd.f32 %v168, %v174
    %s179 = sld [smem:[#allocation7 + $0x2]]
    %v180 = vstv %s179
    %v181 = vadd.f32 %v175, %v180
    %v182 = vadd.f32 %v176, %v180
    %v183 = vadd.f32 %v177, %v180
    %v184 = vadd.f32 %v178, %v180
    %v185 = vmax.f32 %v181, 0.0
    %v186 = vmax.f32 %v182, 0.0
    %v187 = vmax.f32 %v183, 0.0
    %v188 = vmax.f32 %v184, 0.0
    %v189 = vsub.f32 %v185, 1.0
    %v190 = vsub.f32 %v186, 1.0
    %v191 = vsub.f32 %v187, 1.0
    %v192 = vsub.f32 %v188, 1.0
    %s193 = scalar_lea.vmem [#allocation9], 64
    %194 = vst [vmem:[%s193] sm:$0xff] %v189
    %195 = vst [vmem:[%s193 + $0x8] sm:$0xff] %v190
    %196 = vst [vmem:[%s193 + $0x10] sm:$0xff] %v191
    %197 = vst [vmem:[%s193 + $0x18] sm:$0xff] %v192
    %s198 = sld [smem:[#allocation2 + $0x9]]
    %v199 = vstv %s198
    %v200 = vmul.f32 %v52, %v199
    %v201 = vmul.f32 %v53, %v199
    %v202 = vmul.f32 %v54, %v199
    %v203 = vmul.f32 %v55, %v199
    %s204 = sld [smem:[#allocation2 + $0xa]]
    %v205 = vstv %s204
    %v206 = vmul.f32 %v56, %v205
    %v207 = vmul.f32 %v57, %v205
    %v208 = vmul.f32 %v58, %v205
    %v209 = vmul.f32 %v59, %v205
    %v210 = vadd.f32 %v200, %v206
    %v211 = vadd.f32 %v201, %v207
    %v212 = vadd.f32 %v202, %v208
    %v213 = vadd.f32 %v203, %v209
    %s214 = sld [smem:[#allocation2 + $0xb]]
    %v215 = vstv %s214
    %v216 = vmul.f32 %v60, %v215
    %v217 = vmul.f32 %v61, %v215
    %v218 = vmul.f32 %v62, %v215
    %v219 = vmul.f32 %v63, %v215
    %v220 = vadd.f32 %v210, %v216
    %v221 = vadd.f32 %v211, %v217
    %v222 = vadd.f32 %v212, %v218
    %v223 = vadd.f32 %v213, %v219
    %s224 = sld [smem:[#allocation7 + $0x3]]
    %v225 = vstv %s224
    %v226 = vadd.f32 %v220, %v225
    %v227 = vadd.f32 %v221, %v225
    %v228 = vadd.f32 %v222, %v225
    %v229 = vadd.f32 %v223, %v225
    %v230 = vmax.f32 %v226, 0.0
    %v231 = vmax.f32 %v227, 0.0
    %v232 = vmax.f32 %v228, 0.0
    %v233 = vmax.f32 %v229, 0.0
    %v234 = vsub.f32 %v230, 1.0
    %v235 = vsub.f32 %v231, 1.0
    %v236 = vsub.f32 %v232, 1.0
    %v237 = vsub.f32 %v233, 1.0
    %s238 = scalar_lea.vmem [#allocation9], 96
    %239 = vst [vmem:[%s238] sm:$0xff] %v234
    %240 = vst [vmem:[%s238 + $0x8] sm:$0xff] %v235
    %241 = vst [vmem:[%s238 + $0x10] sm:$0xff] %v236
    %242 = vst [vmem:[%s238 + $0x18] sm:$0xff] %v237
    %s243 = sld [smem:[#allocation2 + $0xc]]
    %v244 = vstv %s243
    %v245 = vmul.f32 %v52, %v244
    %v246 = vmul.f32 %v53, %v244
    %v247 = vmul.f32 %v54, %v244
    %v248 = vmul.f32 %v55, %v244
    %s249 = sld [smem:[#allocation2 + $0xd]]
    %v250 = vstv %s249
    %v251 = vmul.f32 %v56, %v250
    %v252 = vmul.f32 %v57, %v250
    %v253 = vmul.f32 %v58, %v250
    %v254 = vmul.f32 %v59, %v250
    %v255 = vadd.f32 %v245, %v251
    %v256 = vadd.f32 %v246, %v252
    %v257 = vadd.f32 %v247, %v253
    %v258 = vadd.f32 %v248, %v254
    %s259 = sld [smem:[#allocation2 + $0xe]]
    %v260 = vstv %s259
    %v261 = vmul.f32 %v60, %v260
    %v262 = vmul.f32 %v61, %v260
    %v263 = vmul.f32 %v62, %v260
    %v264 = vmul.f32 %v63, %v260
    %v265 = vadd.f32 %v255, %v261
    %v266 = vadd.f32 %v256, %v262
    %v267 = vadd.f32 %v257, %v263
    %v268 = vadd.f32 %v258, %v264
    %s269 = sld [smem:[#allocation7 + $0x4]]
    %v270 = vstv %s269
    %v271 = vadd.f32 %v265, %v270
    %v272 = vadd.f32 %v266, %v270
    %v273 = vadd.f32 %v267, %v270
    %v274 = vadd.f32 %v268, %v270
    %v275 = vmax.f32 %v271, 0.0
    %v276 = vmax.f32 %v272, 0.0
    %v277 = vmax.f32 %v273, 0.0
    %v278 = vmax.f32 %v274, 0.0
    %v279 = vsub.f32 %v275, 1.0
    %v280 = vsub.f32 %v276, 1.0
    %v281 = vsub.f32 %v277, 1.0
    %v282 = vsub.f32 %v278, 1.0
    %s283 = scalar_lea.vmem [#allocation9], 128
    %284 = vst [vmem:[%s283] sm:$0xff] %v279
    %285 = vst [vmem:[%s283 + $0x8] sm:$0xff] %v280
    %286 = vst [vmem:[%s283 + $0x10] sm:$0xff] %v281
    %287 = vst [vmem:[%s283 + $0x18] sm:$0xff] %v282
    %s288 = sld [smem:[#allocation2 + $0xf]]
    %v289 = vstv %s288
    %v290 = vmul.f32 %v52, %v289
    %v291 = vmul.f32 %v53, %v289
    %v292 = vmul.f32 %v54, %v289
    %v293 = vmul.f32 %v55, %v289
    %s294 = sld [smem:[#allocation2 + $0x10]]
    %v295 = vstv %s294
    %v296 = vmul.f32 %v56, %v295
    %v297 = vmul.f32 %v57, %v295
    %v298 = vmul.f32 %v58, %v295
    %v299 = vmul.f32 %v59, %v295
    %v300 = vadd.f32 %v290, %v296
    %v301 = vadd.f32 %v291, %v297
    %v302 = vadd.f32 %v292, %v298
    %v303 = vadd.f32 %v293, %v299
    %s304 = sld [smem:[#allocation2 + $0x11]]
    %v305 = vstv %s304
    %v306 = vmul.f32 %v60, %v305
    %v307 = vmul.f32 %v61, %v305
    %v308 = vmul.f32 %v62, %v305
    %v309 = vmul.f32 %v63, %v305
    %v310 = vadd.f32 %v300, %v306
    %v311 = vadd.f32 %v301, %v307
    %v312 = vadd.f32 %v302, %v308
    %v313 = vadd.f32 %v303, %v309
    %s314 = sld [smem:[#allocation7 + $0x5]]
    %v315 = vstv %s314
    %v316 = vadd.f32 %v310, %v315
    %v317 = vadd.f32 %v311, %v315
    %v318 = vadd.f32 %v312, %v315
    %v319 = vadd.f32 %v313, %v315
    %v320 = vmax.f32 %v316, 0.0
    %v321 = vmax.f32 %v317, 0.0
    %v322 = vmax.f32 %v318, 0.0
    %v323 = vmax.f32 %v319, 0.0
    %v324 = vsub.f32 %v320, 1.0
    %v325 = vsub.f32 %v321, 1.0
    %v326 = vsub.f32 %v322, 1.0
    %v327 = vsub.f32 %v323, 1.0
    %s328 = scalar_lea.vmem [#allocation9], 160
    %329 = vst [vmem:[%s328] sm:$0xff] %v324
    %330 = vst [vmem:[%s328 + $0x8] sm:$0xff] %v325
    %331 = vst [vmem:[%s328 + $0x10] sm:$0xff] %v326
    %332 = vst [vmem:[%s328 + $0x18] sm:$0xff] %v327
    // Predicated region
    $region26: #{tpu_custom_call.1} parent=1 // pred_check
      _
    $region27: #{tpu_custom_call.1} parent=1 // pred_check_branch
      %334 = sbr.rel (0) target = $region29
    $region28: #{tpu_custom_call.1} parent=1 // pred_region
      %s336 = ssub.s32 3072, 3072
      %337 = vsyncadd [#allocation4], %s336
      %s338 = sshll.u32 [#allocation9], 4
      %s339 = int_to_ptr.vmem [resolvable:$true] %s338
      %344 = dma.vmem_to_hbm [thread:$0]  %s339, 3072, %s3, [#allocation4], 128, 128, 8
    $region29: #{tpu_custom_call.1} parent=1 // pred_fallthru
      _
    // Predicated region
    $region30: #{tpu_custom_call.1} parent=1 // pred_check
      _
    $region31: #{tpu_custom_call.1} parent=1 // pred_check_branch
      %346 = sbr.rel (0) target = $region33
    $region32: #{tpu_custom_call.1} parent=1 // pred_region
      %347 = dma.done [#allocation4], 3072
    $region33: #{tpu_custom_call.1} parent=1 // pred_fallthru
      _
    %348 = vsyncpa [#allocation3], 1
    %349 = vsyncpa [#allocation4], 1
    %350 = vsyncpa [#allocation5], 1
    %351 = vsyncpa [#allocation6], 1

</llo_original>
